<compile_context>
chip_gen: v6e
topology: v6e:2x2x1
jax: 0.10.0
libtpu: 0.0.40
codegen_flags: <defaults>
</compile_context>

<pallas_src>
import jax
import jax.numpy as jnp
from jax.experimental import pallas as pl
from jax.experimental.pallas import tpu as pltpu

_LANE = 128


def _affine_const_kernel(x_ref, s_ref, t_ref, z_ref):
    # Elementwise hot path: z = x * exp(s) + t.
    # exp -> EUP, mul/add -> VPU; binding resource is the HBM<->VMEM DMA path.
    es = jnp.exp(s_ref[...])                      # (1, dim), once per tile
    z_ref[...] = x_ref[...] * es + t_ref[...]     # broadcast over batch rows


def _round_up(n, m):
    return (n + m - 1) // m * m


def _vmem_config():
    """Return (vmem_limit_bytes, per-x-tile byte budget) for this TPU gen."""
    try:
        cap = pltpu.get_tpu_info().vmem_capacity_bytes
    except Exception:
        cap = 64 * 1024 * 1024  # conservative fallback (v7x per-TC size)
    if cap >= 128 * 1024 * 1024:
        # v5e / v6e: 128 MiB physical VMEM -> big tiles, 96 MiB scoped limit.
        return 96 * 1024 * 1024, 16 * 1024 * 1024
    # v7x: 64 MiB per TensorCore -> keep 4x double-buffered tiles under ~40 MiB.
    return 40 * 1024 * 1024, 6 * 1024 * 1024


def affine_constant_flow_forward(x, s=None, t=None):
    """Forward pass of AffineConstantFlow.

    x: (B, dim); s, t: (1, dim) or None (treated as zeros, NICE scaling-only
    special case). Returns (z: (B, dim), log_det: (1,)).
    """
    B, dim = x.shape
    dtype = x.dtype
    itemsize = jnp.dtype(dtype).itemsize

    if s is None:
        s = jnp.zeros((1, dim), dtype=dtype)
    if t is None:
        t = jnp.zeros((1, dim), dtype=dtype)
    s = s.astype(dtype)
    t = t.astype(dtype)

    # log_det = sum(s, dim=1): tiny reduction over a (1, dim) parameter —
    # keep it out of the gridded kernel so the z store path stays dense.
    log_det = jnp.sum(s, axis=1)

    # ---- Tile sizing ---------------------------------------------------------
    # Dtype-aware sublane granularity: 8 (f32), 16 (bf16/f16), 32 (int8/fp8).
    sublane = max(8, 32 // itemsize)
    vmem_limit, tile_budget = _vmem_config()

    row_bytes = max(dim * itemsize, 1)
    # Rows per tile: ~tile_budget bytes of x per tile, rounded to the sublane
    # multiple. 4 x tile (double-buffered x + z) stays under the scoped limit.
    tb = max(sublane, (tile_budget // row_bytes) // sublane * sublane)

    if tb >= B:
        if B >= 2 * sublane:
            # Force >= 2 grid steps so v7x's two TensorCores both get work
            # (harmless extra ~0.35us step on v5e/v6e).
            tb = _round_up(pl.cdiv(B, 2), sublane)
        else:
            tb = B  # full-extent first dim: legal for any (small) B

    grid_steps = pl.cdiv(B, tb)
    grid = (grid_steps,)

    # No padding / slicing: last dim of every block is the full array extent
    # (legal even when dim % 128 != 0); the ragged last batch tile's
    # out-of-bounds writes are discarded by Pallas (elementwise body -> safe).
    z = pl.pallas_call(
        _affine_const_kernel,
        out_shape=jax.ShapeDtypeStruct((B, dim), dtype),
        grid_spec=pltpu.PrefetchScalarGridSpec(
            num_scalar_prefetch=0,
            grid=grid,
            in_specs=[
                pl.BlockSpec((tb, dim), lambda i: (i, 0)),   # x tile
                pl.BlockSpec((1, dim), lambda i: (0, 0)),    # s (resident)
                pl.BlockSpec((1, dim), lambda i: (0, 0)),    # t (resident)
            ],
            out_specs=pl.BlockSpec((tb, dim), lambda i: (i, 0)),
        ),
        compiler_params=pltpu.CompilerParams(
            dimension_semantics=("parallel",),
            vmem_limit_bytes=vmem_limit,
        ),
        cost_estimate=pl.CostEstimate(
            flops=2 * B * dim,
            transcendentals=dim * grid_steps,   # exp(s) re-evaluated per step
            bytes_accessed=(2 * B * dim + 2 * dim) * itemsize,
        ),
    )(x, s, t)

    return z, log_det


if __name__ == "__main__":
    key = jax.random.PRNGKey(0)
    kx, ks, kt = jax.random.split(key, 3)

    # Small shapes consistent with the module: batch=2, dim=32.
    B, dim = 2, 32
    x = jax.random.normal(kx, (B, dim), dtype=jnp.float32)
    # Deterministic parameter init (torch.randn(1, dim) analogue).
    s = jax.random.normal(ks, (1, dim), dtype=jnp.float32)
    t = jax.random.normal(kt, (1, dim), dtype=jnp.float32)

    z, log_det = affine_constant_flow_forward(x, s, t)
    jax.block_until_ready((z, log_det))

    # Pure-JAX reference check.
    z_ref = x * jnp.exp(s) + t
    ld_ref = jnp.sum(s, axis=1)
    assert z.shape == (B, dim) and log_det.shape == (1,)
    assert jnp.allclose(z, z_ref, atol=1e-5, rtol=1e-5)
    assert jnp.allclose(log_det, ld_ref, atol=1e-5, rtol=1e-5)

    # Also exercise a larger, unaligned, multi-tile shape (ragged last batch
    # tile + non-multiple-of-128 feature dim) to verify the no-pad path.
    B2, dim2 = 2050, 300
    kx2, ks2, kt2 = jax.random.split(jax.random.PRNGKey(1), 3)
    x2 = jax.random.normal(kx2, (B2, dim2), dtype=jnp.float32)
    s2 = jax.random.normal(ks2, (1, dim2), dtype=jnp.float32)
    t2 = jax.random.normal(kt2, (1, dim2), dtype=jnp.float32)
    z2, ld2 = affine_constant_flow_forward(x2, s2, t2)
    jax.block_until_ready((z2, ld2))
    assert jnp.allclose(z2, x2 * jnp.exp(s2) + t2, atol=1e-5, rtol=1e-5)
    assert jnp.allclose(ld2, jnp.sum(s2, axis=1), atol=1e-4, rtol=1e-5)

    print("KERNEL_OK")
</pallas_src>

<mosaic_0001>
module attributes {stable_mosaic.version = 11 : i64} {
  func.func @_affine_const_kernel(%arg0: i32, %arg1: memref<2x32xf32, #tpu.memory_space<vmem>>, %arg2: memref<1x32xf32, #tpu.memory_space<vmem>>, %arg3: memref<1x32xf32, #tpu.memory_space<vmem>>, %arg4: memref<2x32xf32, #tpu.memory_space<vmem>>) attributes {dimension_semantics = [#tpu.dimension_semantics<parallel>], iteration_bounds = array<i64: 1>, scalar_prefetch = 0 : i64, scratch_operands = 0 : i64, tpu.core_type = #tpu.core_type<tc>, window_params = [{transform_indices = @transform_0, window_bounds = array<i64: 2, 32>}, {pipeline_mode = #tpu.pipeline_mode<synchronous>, transform_indices = @transform_1, window_bounds = array<i64: 1, 32>}, {pipeline_mode = #tpu.pipeline_mode<synchronous>, transform_indices = @transform_2, window_bounds = array<i64: 1, 32>}, {transform_indices = @transform_3, window_bounds = array<i64: 2, 32>}]} {
    %c0 = arith.constant 0 : index
    %c0_0 = arith.constant 0 : index
    %0 = vector.load %arg2[%c0, %c0_0] : memref<1x32xf32, #tpu.memory_space<vmem>>, vector<1x32xf32>
    %1 = math.exp %0 : vector<1x32xf32>
    %c0_1 = arith.constant 0 : index
    %c0_2 = arith.constant 0 : index
    %2 = vector.load %arg1[%c0_1, %c0_2] : memref<2x32xf32, #tpu.memory_space<vmem>>, vector<2x32xf32>
    %3 = vector.broadcast %1 : vector<1x32xf32> to vector<2x32xf32>
    %4 = arith.mulf %2, %3 : vector<2x32xf32>
    %c0_3 = arith.constant 0 : index
    %c0_4 = arith.constant 0 : index
    %5 = vector.load %arg3[%c0_3, %c0_4] : memref<1x32xf32, #tpu.memory_space<vmem>>, vector<1x32xf32>
    %6 = vector.broadcast %5 : vector<1x32xf32> to vector<2x32xf32>
    %7 = arith.addf %4, %6 : vector<2x32xf32>
    %c0_5 = arith.constant 0 : index
    %c0_6 = arith.constant 0 : index
    %8 = vector.load %arg4[%c0_5, %c0_6] : memref<2x32xf32, #tpu.memory_space<vmem>>, vector<2x32xf32>
    tpu.vector_store %arg4[%c0_5, %c0_6], %7 {strides = array<i32>} : memref<2x32xf32, #tpu.memory_space<vmem>>, vector<2x32xf32>,
    return
  }
  func.func @transform_0(%arg0: i32) -> (i32, i32) {
    %c0_i32 = arith.constant 0 : i32
    %c0_i32_0 = arith.constant 0 : i32
    return %arg0, %c0_i32 : i32, i32
  }
  func.func @transform_1(%arg0: i32) -> (i32, i32) {
    %c0_i32 = arith.constant 0 : i32
    %c0_i32_0 = arith.constant 0 : i32
    %c0_i32_1 = arith.constant 0 : i32
    return %c0_i32, %c0_i32_0 : i32, i32
  }
  func.func @transform_2(%arg0: i32) -> (i32, i32) {
    %c0_i32 = arith.constant 0 : i32
    %c0_i32_0 = arith.constant 0 : i32
    %c0_i32_1 = arith.constant 0 : i32
    return %c0_i32, %c0_i32_0 : i32, i32
  }
  func.func @transform_3(%arg0: i32) -> (i32, i32) {
    %c0_i32 = arith.constant 0 : i32
    %c0_i32_0 = arith.constant 0 : i32
    return %arg0, %c0_i32 : i32, i32
  }
}

</mosaic_0001>

<llo_original>
// kernel: tpu_custom_call.1
$region0: #{tpu_custom_call.1}
  #allocation0 [shape = 'u32[]', space=smem, size = 0x4, offset = 0x4, fixed_abs, tag = 'smem constant byte address 0x4 - core index']
  #allocation1 [shape = 'u32[144,128]{1,0:T(1,128)}', space=vmem, size = 0x12000, scoped, tag = 'internal scratch']
  %s0 = inlined_call_operand.hbm [shape: f32[2,32], index: 0, kind: input, shape index: {}]
  %s1 = inlined_call_operand.vmem [shape: f32[1,32], index: 1, kind: input, shape index: {}]
  %s2 = inlined_call_operand.vmem [shape: f32[1,32], index: 2, kind: input, shape index: {}]
  %s3 = inlined_call_operand.hbm [shape: f32[2,32], index: 3, kind: output, shape index: {}]
  %s4 = sld [smem:[#allocation0]]
  $region26: #{tpu_custom_call.1} parent=0
    _
  %s6 = ssub.s32 1, %s4
  %s7 = scalar_select 0, %s6, %s4
  $region1: #{tpu_custom_call.1} parent=0
    #allocation2 [shape = 'u8[1024]{0}', space=vmem, size = 0x400, scoped, tag = 'input window, operand 0, single buffered']
    #allocation3 [shape = 's32[1]{0}', space=sflag, size = 0x4, scoped, tag = 'scoped memory for tpu_custom_call.1']
    #allocation4 [shape = 's32[1]{0}', space=sflag, size = 0x4, scoped, tag = 'scoped memory for tpu_custom_call.1']
    #allocation5 [shape = 'u8[1024]{0}', space=vmem, size = 0x400, scoped, tag = 'output window, operand 0, single buffered']
    %8 = vsyncpa [#allocation3], 0
    %9 = vsyncpa [#allocation4], 0
    // Predicated region
    $region2: #{tpu_custom_call.1} parent=1 // pred_check
      _
    $region3: #{tpu_custom_call.1} parent=1 // pred_check_branch
      %11 = sbr.rel (0) target = $region5
    $region4: #{tpu_custom_call.1} parent=1 // pred_region
      %s13 = ssub.s32 32, 32
      %14 = vsyncadd [#allocation3], %s13
      %s16 = sshll.u32 [#allocation2], 4
      %s17 = int_to_ptr.vmem [resolvable:$true] %s16
      %19 = dma.hbm_to_vmem [thread:$0]  %s0, 32, %s17, [#allocation3]
    $region5: #{tpu_custom_call.1} parent=1 // pred_fallthru
      _
    // Predicated region
    $region6: #{tpu_custom_call.1} parent=1 // pred_check
      _
    $region7: #{tpu_custom_call.1} parent=1 // pred_check_branch
      %21 = sbr.rel (0) target = $region9
    $region8: #{tpu_custom_call.1} parent=1 // pred_region
      _
    $region9: #{tpu_custom_call.1} parent=1 // pred_fallthru
      _
    // Predicated region
    $region10: #{tpu_custom_call.1} parent=1 // pred_check
      _
    $region11: #{tpu_custom_call.1} parent=1 // pred_check_branch
      %23 = sbr.rel (0) target = $region13
    $region12: #{tpu_custom_call.1} parent=1 // pred_region
      _
    $region13: #{tpu_custom_call.1} parent=1 // pred_fallthru
      _
    // Predicated region
    $region14: #{tpu_custom_call.1} parent=1 // pred_check
      _
    $region15: #{tpu_custom_call.1} parent=1 // pred_check_branch
      %25 = sbr.rel (0) target = $region17
    $region16: #{tpu_custom_call.1} parent=1 // pred_region
      %26 = dma.done [#allocation3], 32
    $region17: #{tpu_custom_call.1} parent=1 // pred_fallthru
      _
    %v27 = vld [vmem:[%s1] sm:$0x1]
    %v28 = vmul.f32 %v27, 1.442695
    %v29 = vpow.pop %v28
    %v30 = vld [vmem:[#allocation2] sm:$0x3]
    %v32 = vlaneseq
    %v33 = vshrl.u32 %v32, 7
    %v34 = vsub.s32 0, %v33
    %v35 = vrot.slane %v29, %v34
    %v37 = vmul.f32 %v30, %v35
    %v38 = vld [vmem:[%s2] sm:$0x1]
    %v40 = vlaneseq
    %v41 = vshrl.u32 %v40, 7
    %v42 = vsub.s32 0, %v41
    %v43 = vrot.slane %v38, %v42
    %v45 = vadd.f32 %v37, %v43
    %vm46 = vcmask 254976
    %47 = vst.msk [vmem:[#allocation5] sm:$0x3] %vm46, %v45
    // Predicated region
    $region18: #{tpu_custom_call.1} parent=1 // pred_check
      _
    $region19: #{tpu_custom_call.1} parent=1 // pred_check_branch
      %49 = sbr.rel (0) target = $region21
    $region20: #{tpu_custom_call.1} parent=1 // pred_region
      %s51 = ssub.s32 32, 32
      %52 = vsyncadd [#allocation4], %s51
      %s54 = sshll.u32 [#allocation5], 4
      %s55 = int_to_ptr.vmem [resolvable:$true] %s54
      %57 = dma.vmem_to_hbm [thread:$0]  %s55, 32, %s3, [#allocation4]
    $region21: #{tpu_custom_call.1} parent=1 // pred_fallthru
      _
    // Predicated region
    $region22: #{tpu_custom_call.1} parent=1 // pred_check
      _
    $region23: #{tpu_custom_call.1} parent=1 // pred_check_branch
      %59 = sbr.rel (0) target = $region25
    $region24: #{tpu_custom_call.1} parent=1 // pred_region
      %60 = dma.done [#allocation4], 32
    $region25: #{tpu_custom_call.1} parent=1 // pred_fallthru
      _
    %61 = vsyncpa [#allocation3], 1
    %62 = vsyncpa [#allocation4], 1

</llo_original>
